<compile_context>
chip_gen: v7x
topology: tpu7x:2x2x1
jax: 0.10.0
libtpu: 0.0.40
codegen_flags: <defaults>
</compile_context>

<pallas_src>
import functools
import math

import jax
import jax.numpy as jnp
from jax.experimental import pallas as pl
from jax.experimental.pallas import tpu as pltpu


def _round_up(x: int, m: int) -> int:
    return (x + m - 1) // m * m


def _make_pe(d_model: int, max_len: int = 5000, dtype=jnp.float32) -> jnp.ndarray:
    """Sinusoidal positional-encoding buffer, (max_len, 1, d_model).

    Same math as the PyTorch module's registered buffer (even d_model, as the
    module itself requires).  Built once at init by `PositionalEncoding`.
    """
    position = jnp.arange(max_len, dtype=jnp.float32)[:, None]            # (max_len, 1)
    div_term = jnp.exp(jnp.arange(0, d_model, 2, dtype=jnp.float32)
                       * (-math.log(10000.0) / d_model))                  # (d_model//2,)
    angles = position * div_term                                          # (max_len, d//2)
    pe = jnp.zeros((max_len, d_model), dtype=jnp.float32)
    pe = pe.at[:, 0::2].set(jnp.sin(angles))
    pe = pe.at[:, 1::2].set(jnp.cos(angles))
    return pe[:, None, :].astype(dtype)                                   # (max_len, 1, d)


# --------------------------------------------------------------------------- #
# Kernels
# --------------------------------------------------------------------------- #
def _pe_add_bcast_kernel(x_ref, pe_ref, o_ref):
    # x_ref: (ts, B, D), pe_ref: (ts, 1, D) -> broadcast add over the batch axis.
    o_ref[...] = (x_ref[...] + pe_ref[...]).astype(o_ref.dtype)


def _pe_gen_add_kernel(x_ref, o_ref, *, batch, row_tile, neg_ln_base_over_d):
    # Flattened-rows path: x_ref/o_ref are (tr, D) tiles of the (seq*batch, D)
    # view.  pe[row // batch, lane] is generated on the fly; exp/sin run on the
    # EUP, which is idle in this HBM-bound kernel.
    tr, d = x_ref.shape
    r0 = pl.program_id(0) * row_tile
    rows = jax.lax.broadcasted_iota(jnp.int32, (tr, 1), 0) + r0           # (tr, 1)
    # seq position = row // batch, computed exactly in f32 as
    # floor((row + 0.5) / batch): exact because batch < 8 keeps the 0.5/batch
    # margin to the integer boundaries far above f32 rounding error.
    pos = jnp.floor((rows.astype(jnp.float32) + 0.5) * (1.0 / batch))     # (tr, 1)
    lane = jax.lax.broadcasted_iota(jnp.int32, (1, d), 1)                 # (1, d)
    inv_freq = jnp.exp((lane & ~1).astype(jnp.float32) * neg_ln_base_over_d)
    # Even lanes want sin, odd lanes cos; cos(a) == sin(a + pi/2) -> one
    # transcendental per element instead of two.
    phase = jnp.where((lane & 1) == 1, jnp.float32(math.pi / 2), jnp.float32(0.0))
    pe = jnp.sin(pos * inv_freq + phase)                                  # (tr, d) f32
    o_ref[...] = (x_ref[...].astype(jnp.float32) + pe).astype(o_ref.dtype)


# --------------------------------------------------------------------------- #
# Tile choosers
# --------------------------------------------------------------------------- #
def _choose_seq_tile(seq_len: int, batch: int, d_model: int, itemsize: int) -> int:
    """Seq tile for the batch>=8 path: keep the double-buffered x/out/pe VMEM
    windows under ~20 MiB, leave >= 2 grid programs (v7x megacore), and prefer
    a divisor of seq_len (no ragged tail)."""
    pad_b = _round_up(batch, 8)
    pad_d = _round_up(d_model, 128)
    # x-in + out tiles (2x double-buffered each) + pe tile whose single batch
    # row pads to 8 sublanes in VMEM (double-buffered).
    bytes_per_seq_row = itemsize * pad_d * (4 * pad_b + 2 * 8)
    ts = max(1, (20 << 20) // bytes_per_seq_row)
    ts = min(ts, 1024, seq_len)
    if seq_len > 8:
        ts = min(ts, pl.cdiv(seq_len, 2))            # guarantee >= 2 programs
    for cand in range(ts, max(1, ts // 2) - 1, -1):  # prefer an exact divisor
        if seq_len % cand == 0:
            return cand
    return ts


def _choose_row_tile(n_rows: int, d_model: int, itemsize: int) -> int:
    """Row tile for the flattened batch<8 path (rows are the sublane dim, so the
    tile must be a multiple of 8 unless it covers the whole array)."""
    pad_d = _round_up(d_model, 128)
    # x-in + out tiles (double-buffered) plus ~12 B/elem of f32 compute temps
    # (generated pe tile + the f32 upcast of x).
    bytes_per_row = pad_d * (4 * itemsize + 12)
    tr = max(8, (16 << 20) // bytes_per_row)
    tr = min(tr, 2048)
    if n_rows > 8:
        tr = min(tr, _round_up(pl.cdiv(n_rows, 2), 8))   # >= 2 programs (v7x)
    if tr >= n_rows:
        return n_rows                                    # single full-array block
    tr -= tr % 8
    for cand in range(tr, max(8, tr // 2) - 1, -8):      # prefer an exact divisor
        if n_rows % cand == 0:
            return cand
    return tr


# --------------------------------------------------------------------------- #
# Wrapper
# --------------------------------------------------------------------------- #
def positional_encoding_forward(x, pe=None, *, max_len: int = 5000,
                                seq_tile=None, row_tile=None):
    """out = x + pe[:seq_len];  x: (seq_len, batch, d_model).

    batch < 8  -> pe is generated in-kernel (any `pe` argument is unused).
    batch >= 8 -> pe ((max_len, 1, d_model) or (max_len, d_model)) is DMA'd;
                  pass a buffer already in x.dtype (see PositionalEncoding) so
                  no per-call cast is needed.
    """
    seq_len, batch, d_model = x.shape
    if d_model % 2 != 0:
        raise ValueError("sinusoidal positional encoding requires an even d_model")
    if pe is not None and pe.ndim == 2:
        pe = pe[:, None, :]
    if pe is not None:
        max_len = pe.shape[0]
    if seq_len > max_len:
        raise ValueError("seq_len exceeds positional-encoding max_len")

    itemsize = jnp.dtype(x.dtype).itemsize
    neg_c = -math.log(10000.0) / d_model
    cparams = pltpu.CompilerParams(
        dimension_semantics=("parallel",),          # megacore split on v7x
        vmem_limit_bytes=32 * 1024 * 1024,
    )

    if batch < 8:
        # Flat path: (seq*batch, d_model) rows are sublane-dense; pe generated
        # in-kernel -> no pe HBM traffic, no 8/batch-padded stores.
        n_rows = seq_len * batch
        tr = row_tile if row_tile is not None else _choose_row_tile(n_rows, d_model, itemsize)
        kernel = functools.partial(_pe_gen_add_kernel, batch=batch, row_tile=tr,
                                   neg_ln_base_over_d=neg_c)
        out = pl.pallas_call(
            kernel,
            out_shape=jax.ShapeDtypeStruct((n_rows, d_model), x.dtype),
            grid_spec=pltpu.PrefetchScalarGridSpec(
                num_scalar_prefetch=0,
                grid=(pl.cdiv(n_rows, tr),),
                in_specs=[pl.BlockSpec((tr, d_model), lambda i: (i, 0))],
                out_specs=pl.BlockSpec((tr, d_model), lambda i: (i, 0)),
            ),
            compiler_params=cparams,
        )(x.reshape(n_rows, d_model))
        return out.reshape(seq_len, batch, d_model)

    # Broadcast path (batch >= 8): tile over seq, DMA the pe rows alongside x.
    if pe is None:
        pe = _make_pe(d_model, max_len, x.dtype)
    elif pe.dtype != x.dtype:
        pe = pe[:seq_len].astype(x.dtype)               # cast only the rows we use
    ts = seq_tile if seq_tile is not None else _choose_seq_tile(seq_len, batch, d_model, itemsize)
    return pl.pallas_call(
        _pe_add_bcast_kernel,
        out_shape=jax.ShapeDtypeStruct((seq_len, batch, d_model), x.dtype),
        grid_spec=pltpu.PrefetchScalarGridSpec(
            num_scalar_prefetch=0,
            grid=(pl.cdiv(seq_len, ts),),
            in_specs=[
                pl.BlockSpec((ts, batch, d_model), lambda i: (i, 0, 0)),
                # full pe buffer; the BlockSpec window reads only rows [0, seq_len)
                pl.BlockSpec((ts, 1, d_model), lambda i: (i, 0, 0)),
            ],
            out_specs=pl.BlockSpec((ts, batch, d_model), lambda i: (i, 0, 0)),
        ),
        compiler_params=cparams,
    )(x, pe)


class PositionalEncoding:
    """Forward-pass equivalent of the PyTorch module.  The pe buffer is built
    once at init in the model dtype (register_buffer analogue), so there is no
    per-call full-max_len cast."""

    def __init__(self, d_model, max_len=5000, dtype=jnp.float32):
        self.d_model, self.max_len = d_model, max_len
        self.pe = _make_pe(d_model, max_len, dtype)

    def __call__(self, x, **tile_overrides):
        return positional_encoding_forward(x, self.pe, **tile_overrides)


# --------------------------------------------------------------------------- #
# Self-test
# --------------------------------------------------------------------------- #
if __name__ == "__main__":
    MAX_LEN = 64

    def run_case(name, key, seq_len, batch, d_model, dtype, **tile_overrides):
        x = jax.random.normal(key, (seq_len, batch, d_model),
                              dtype=jnp.float32).astype(dtype)
        module = PositionalEncoding(d_model, max_len=MAX_LEN, dtype=dtype)
        out = jax.block_until_ready(module(x, **tile_overrides))

        pe_f32 = _make_pe(d_model, MAX_LEN, jnp.float32)
        ref = (x.astype(jnp.float32) + pe_f32[:seq_len]).astype(dtype)

        assert out.shape == x.shape and out.dtype == x.dtype, name
        tol = 2e-5 if dtype == jnp.float32 else 5e-2     # bf16: > one ulp at |v|~5
        ok = jnp.allclose(out.astype(jnp.float32), ref.astype(jnp.float32),
                          atol=tol, rtol=tol)
        assert bool(ok), f"mismatch vs reference in case '{name}'"

    k1, k2, k3, k4 = jax.random.split(jax.random.PRNGKey(0), 4)
    # batch < 8 (flat, in-kernel pe) path, f32, multi-block grid from the chooser.
    run_case("flat_f32", k1, 12, 2, 32, jnp.float32)
    # flat path, bf16, forced tiny row tile -> ragged last block (masked edge writes).
    run_case("flat_bf16_ragged", k2, 13, 3, 128, jnp.bfloat16, row_tile=8)
    # batch >= 8 (broadcast-add, DMA'd pe) path, f32, forced seq tile -> ragged tail.
    run_case("bcast_f32_ragged", k3, 12, 8, 128, jnp.float32, seq_tile=8)
    # broadcast path, bf16, default chooser (multi-block, divisor tile, cached bf16 pe).
    run_case("bcast_bf16", k4, 9, 16, 64, jnp.bfloat16)

    print("KERNEL_OK")
</pallas_src>

<mosaic_0001>
module attributes {stable_mosaic.version = 11 : i64} {
  func.func @_pe_gen_add_kernel(%arg0: i32, %arg1: memref<8x32xf32, #tpu.memory_space<vmem>>, %arg2: memref<8x32xf32, #tpu.memory_space<vmem>>) attributes {dimension_semantics = [#tpu.dimension_semantics<parallel>], iteration_bounds = array<i64: 3>, scalar_prefetch = 0 : i64, scratch_operands = 0 : i64, tpu.core_type = #tpu.core_type<tc>, window_params = [{transform_indices = @transform_0, window_bounds = array<i64: 8, 32>}, {transform_indices = @transform_1, window_bounds = array<i64: 8, 32>}]} {
    %c8_i32 = arith.constant 8 : i32
    %0 = arith.muli %arg0, %c8_i32 : i32
    %1 = tpu.iota {dimensions = array<i32: 0>} : vector<8x1xi32>
    %2 = vector.broadcast %0 : i32 to vector<8x1xi32>
    %3 = arith.addi %1, %2 : vector<8x1xi32>
    %4 = arith.sitofp %3 : vector<8x1xi32> to vector<8x1xf32>
    %cst = arith.constant 5.000000e-01 : f32
    %5 = vector.broadcast %cst : f32 to vector<8x1xf32>
    %6 = arith.addf %4, %5 : vector<8x1xf32>
    %cst_0 = arith.constant 5.000000e-01 : f32
    %7 = vector.broadcast %cst_0 : f32 to vector<8x1xf32>
    %8 = arith.mulf %6, %7 : vector<8x1xf32>
    %9 = math.floor %8 : vector<8x1xf32>
    %10 = tpu.iota {dimensions = array<i32: 1>} : vector<1x32xi32>
    %c-2_i32 = arith.constant -2 : i32
    %11 = vector.broadcast %c-2_i32 : i32 to vector<1x32xi32>
    %12 = arith.andi %10, %11 : vector<1x32xi32>
    %13 = arith.sitofp %12 : vector<1x32xi32> to vector<1x32xf32>
    %cst_1 = arith.constant -0.287823141 : f32
    %14 = vector.broadcast %cst_1 : f32 to vector<1x32xf32>
    %15 = arith.mulf %13, %14 : vector<1x32xf32>
    %16 = math.exp %15 : vector<1x32xf32>
    %c1_i32 = arith.constant 1 : i32
    %17 = vector.broadcast %c1_i32 : i32 to vector<1x32xi32>
    %18 = arith.andi %10, %17 : vector<1x32xi32>
    %c1_i32_2 = arith.constant 1 : i32
    %19 = vector.broadcast %c1_i32_2 : i32 to vector<1x32xi32>
    %20 = arith.cmpi eq, %18, %19 : vector<1x32xi32>
    %cst_3 = arith.constant 1.57079637 : f32
    %cst_4 = arith.constant 0.000000e+00 : f32
    %21 = vector.broadcast %cst_3 : f32 to vector<1x32xf32>
    %22 = vector.broadcast %cst_4 : f32 to vector<1x32xf32>
    %23 = arith.select %20, %21, %22 : vector<1x32xi1>, vector<1x32xf32>
    %24 = vector.broadcast %9 : vector<8x1xf32> to vector<8x32xf32>
    %25 = vector.broadcast %16 : vector<1x32xf32> to vector<8x32xf32>
    %26 = arith.mulf %24, %25 : vector<8x32xf32>
    %27 = vector.broadcast %23 : vector<1x32xf32> to vector<8x32xf32>
    %28 = arith.addf %26, %27 : vector<8x32xf32>
    %29 = math.sin %28 : vector<8x32xf32>
    %c0 = arith.constant 0 : index
    %c0_5 = arith.constant 0 : index
    %30 = vector.load %arg1[%c0, %c0_5] : memref<8x32xf32, #tpu.memory_space<vmem>>, vector<8x32xf32>
    %31 = arith.addf %30, %29 : vector<8x32xf32>
    %c0_6 = arith.constant 0 : index
    %c0_7 = arith.constant 0 : index
    %32 = vector.load %arg2[%c0_6, %c0_7] : memref<8x32xf32, #tpu.memory_space<vmem>>, vector<8x32xf32>
    tpu.vector_store %arg2[%c0_6, %c0_7], %31 {strides = array<i32>} : memref<8x32xf32, #tpu.memory_space<vmem>>, vector<8x32xf32>,
    return
  }
  func.func @transform_0(%arg0: i32) -> (i32, i32) {
    %c0_i32 = arith.constant 0 : i32
    %c0_i32_0 = arith.constant 0 : i32
    return %arg0, %c0_i32 : i32, i32
  }
  func.func @transform_1(%arg0: i32) -> (i32, i32) {
    %c0_i32 = arith.constant 0 : i32
    %c0_i32_0 = arith.constant 0 : i32
    return %arg0, %c0_i32 : i32, i32
  }
}

</mosaic_0001>

<llo_original>
// kernel: tpu_custom_call.1
$region0: #{tpu_custom_call.1}
  #allocation0 [shape = 'u32[]', space=smem, size = 0x4, offset = 0x4, fixed_abs, tag = 'smem constant byte address 0x4 - core index']
  #allocation1 [shape = 'u32[144,128]{1,0:T(1,128)}', space=vmem, size = 0x12000, scoped, tag = 'internal scratch']
  %s0 = inlined_call_operand.hbm [shape: f32[24,32], index: 0, kind: input, shape index: {}]
  %s1 = inlined_call_operand.hbm [shape: f32[24,32], index: 1, kind: output, shape index: {}]
  %s2 = sld [smem:[#allocation0]]
  $region41: #{tpu_custom_call.1} parent=0
    _
  %s4 = ssub.s32 1, %s2
  %s5 = scalar_select 0, %s4, %s2
  $region1: #{tpu_custom_call.1} parent=0
    #allocation2 [shape = 'u8[8192]{0}', space=vmem, size = 0x2000, scoped, tag = 'input window, operand 0']
    #allocation3 [shape = 's32[2]{0}', space=sflag, size = 0x8, scoped, tag = 'scoped memory for tpu_custom_call.1']
    #allocation4 [shape = 's32[2]{0}', space=sflag, size = 0x8, scoped, tag = 'scoped memory for tpu_custom_call.1']
    #allocation5 [shape = 'u8[8192]{0}', space=vmem, size = 0x2000, scoped, tag = 'output window, operand 0']
    %6 = vsyncpa [#allocation3], 0
    %s7 = scalar_lea.sflag [#allocation3], 1
    %8 = vsyncpa %s7, 0
    %9 = vsyncpa [#allocation4], 0
    %s10 = scalar_lea.sflag [#allocation4], 1
    %11 = vsyncpa %s10, 0
    loop: start=0, step=1, limit=5
    $region2: #{tpu_custom_call.1} parent=1 // loop_pre_header
      _
    $region3: #{tpu_custom_call.1} parent=1 // loop_header
      %s13 = sphi 0, %s17
      %p14 = scmp.ge.s32.totalorder %s13, 5
      %s23 = sphi 0, %s25
      %s26 = sphi 0, %s23
      %s27 = sphi 0, %s26
      %s43 = sphi 0, %s27
      %s49 = sphi 0, %s51
      %s52 = sphi 0, %s49
      %s53 = sphi 0, %s52
      %s69 = sphi 0, %s53
    $region4: #{tpu_custom_call.1} parent=1 // loop_header_branch
      %16 = sbr.rel (%p14) target = $region8
    $region5: #{tpu_custom_call.1} parent=1 // loop_body
      %s18 = ssub.s32 %s13, 1
      %s19 = ssub.s32 %s13, 2
      %s20 = sadd.s32 %s13, 1
      %s21 = ssub.s32 %s13, %s20
      %p22 = scmp.eq.s32.totalorder %s21, 0
      %s24 = sadd.s32 %s23, 1
      %s25 = scalar_select %p22, %s23, %s24
      %p28 = pneg %p22
      %p29 = scmp.eq.s32.totalorder %s13, 2
      %p30 = por %p28, %p29
      %p31 = scmp.ne.s32.totalorder %s23, %s26
      %p32 = scmp.eq.s32.totalorder %s13, 0
      %p33 = por %p31, %p32
      %p34 = scmp.ne.s32.totalorder %s23, %s26
      %p35 = scmp.eq.s32.totalorder %s18, 2
      %p36 = por %p34, %p35
      %p37 = scmp.ne.s32.totalorder %s26, %s27
      %p38 = scmp.eq.s32.totalorder %s18, 0
      %p39 = por %p37, %p38
      %p40 = scmp.ne.s32.totalorder %s26, %s27
      %p41 = scmp.eq.s32.totalorder %s19, 2
      %p42 = por %p40, %p41
      %p44 = scmp.ne.s32.totalorder %s27, %s43
      %p45 = scmp.eq.s32.totalorder %s19, 0
      %p46 = por %p44, %p45
      %s47 = ssub.s32 %s13, %s20
      %p48 = scmp.eq.s32.totalorder %s47, 0
      %s50 = sadd.s32 %s49, 1
      %s51 = scalar_select %p48, %s49, %s50
      %p54 = pneg %p48
      %p55 = scmp.eq.s32.totalorder %s13, 2
      %p56 = por %p54, %p55
      %p57 = scmp.ne.s32.totalorder %s49, %s52
      %p58 = scmp.eq.s32.totalorder %s13, 0
      %p59 = por %p57, %p58
      %p60 = scmp.ne.s32.totalorder %s49, %s52
      %p61 = scmp.eq.s32.totalorder %s18, 2
      %p62 = por %p60, %p61
      %p63 = scmp.ne.s32.totalorder %s52, %s53
      %p64 = scmp.eq.s32.totalorder %s18, 0
      %p65 = por %p63, %p64
      %p66 = scmp.ne.s32.totalorder %s52, %s53
      %p67 = scmp.eq.s32.totalorder %s19, 2
      %p68 = por %p66, %p67
      %p70 = scmp.ne.s32.totalorder %s53, %s69
      %p71 = scmp.eq.s32.totalorder %s19, 0
      %p72 = por %p70, %p71
      %p73 = scmp.le.s32.totalorder 1, %s13
      %p74 = scmp.lt.s32.totalorder %s13, 4
      %p75 = pnand %p73, %p74
      %p76 = pneg %p75
      // Predicated region
      $region9: #{tpu_custom_call.1} parent=5 // pred_check
        _
      $region10: #{tpu_custom_call.1} parent=5 // pred_check_branch
        %78 = sbr.rel (%p75) target = $region12
      $region11: #{tpu_custom_call.1} parent=5 // pred_region
        %s79 = ssub.s32 %s13, 1
      $region12: #{tpu_custom_call.1} parent=5 // pred_fallthru
        _
      %p80 = scmp.lt.s32.totalorder %s13, 3
      // Predicated region
      $region13: #{tpu_custom_call.1} parent=5 // pred_check
        %p81 = pneg %p80
      $region14: #{tpu_custom_call.1} parent=5 // pred_check_branch
        %83 = sbr.rel (%p81) target = $region16
      $region15: #{tpu_custom_call.1} parent=5 // pred_region
        // Predicated region
        $region17: #{tpu_custom_call.1} parent=15 // pred_check
          %p84 = pneg %p33
        $region18: #{tpu_custom_call.1} parent=15 // pred_check_branch
          %86 = sbr.rel (%p84) target = $region20
        $region19: #{tpu_custom_call.1} parent=15 // pred_region
          %s87 = sand.u32 %s23, 1
          %s88 = scalar_lea.sflag [#allocation3], %s87
          %s89 = sand.u32 %s23, 1
          %s90 = smul.addr %s89, 8
          %s91 = scalar_lea.vmem [#allocation2], %s90
          %s93 = ssub.s32 128, 128
          %94 = vsyncadd %s88, %s93
          %s95 = smul.addr %s13, 128
          %s96 = scalar_lea.hbm %s0, %s95
          %s98 = sshll.u32 %s91, 4
          %s99 = int_to_ptr.vmem [resolvable:$true] %s98
          %101 = dma.hbm_to_vmem [thread:$0]  %s96, 128, %s99, %s88
        $region20: #{tpu_custom_call.1} parent=15 // pred_fallthru
          _
      $region16: #{tpu_custom_call.1} parent=5 // pred_fallthru
        _
      %p102 = scmp.le.s32.totalorder 1, %s13
      %p103 = scmp.lt.s32.totalorder %s13, 4
      %p104 = pnand %p102, %p103
      %p105 = pneg %p104
      // Predicated region
      $region21: #{tpu_custom_call.1} parent=5 // pred_check
        _
      $region22: #{tpu_custom_call.1} parent=5 // pred_check_branch
        %107 = sbr.rel (%p104) target = $region24
      $region23: #{tpu_custom_call.1} parent=5 // pred_region
        %s108 = ssub.s32 %s13, 1
        %s109 = sand.u32 %s26, 1
        %s110 = scalar_lea.sflag [#allocation3], %s109
        %s111 = sand.u32 %s26, 1
        %s112 = smul.addr %s111, 8
        %s113 = scalar_lea.vmem [#allocation2], %s112
        // Predicated region
        $region25: #{tpu_custom_call.1} parent=23 // pred_check
          %p114 = pneg %p39
        $region26: #{tpu_custom_call.1} parent=23 // pred_check_branch
          %116 = sbr.rel (%p114) target = $region28
        $region27: #{tpu_custom_call.1} parent=23 // pred_region
          %117 = dma.done %s110, 128
        $region28: #{tpu_custom_call.1} parent=23 // pred_fallthru
          _
        %s118 = sand.u32 %s26, 1
        %s119 = scalar_lea.sflag [#allocation3], %s118
        %s120 = sand.u32 %s26, 1
        %s121 = smul.addr %s120, 8
        %s122 = scalar_lea.vmem [#allocation2], %s121
        %p123 = pneg %p39
        %p124 = pneg %p36
        %p125 = pneg %p65
        %p126 = pneg %p62
        %s127 = sand.u32 %s52, 1
        %s128 = scalar_lea.sflag [#allocation4], %s127
        %s129 = sand.u32 %s52, 1
        %s130 = smul.addr %s129, 8
        %s131 = scalar_lea.vmem [#allocation5], %s130
        %s132 = smul.u32 %s18, 8
        %v133 = vlaneseq
        %v134 = vshrl.u32 %v133, 7
        %v135 = vstv %s132
        %v136 = vadd.s32 %v134, %v135
        %v137 = vcvt.s32.f32 %v136
        %v138 = vadd.f32 %v137, 0.5
        %v139 = vmul.f32 %v138, 0.5
        %v140 = vfloor.f32 %v139
        %v141 = vlaneseq
        %v142 = vand.u32 %v141, 127
        %v143 = vand.u32 %v142, 4294967294
        %v144 = vcvt.s32.f32 %v143
        %v145 = vmul.f32 %v144, -0.28782314
        %v146 = vmul.f32 %v145, 1.442695
        %v147 = vpow.pop %v146
        %v148 = vand.u32 %v142, 1
        %vm149 = vcmp.eq.s32.totalorder %v148, 1
        %v150 = vsel %vm149, 1.5707964, 0.0
        %v151 = vmul.f32 %v140, %v147
        %v152 = vadd.f32 %v151, %v150
        %v153 = vand.u32 2147483647, %v152
        %vm154 = vcmp.le.f32.partialorder %v153, 0.7853982
        %vm155 = vcmp.lt.s32.totalorder %v152, 0
        %v156 = vand.u32 %v152, 2139095040
        %v157 = vshrl.u32 %v156, 23
        %v158 = vsub.s32 %v157, 127
        %v159 = vand.u32 2147483647, %v152
        %v160 = vand.u32 %v159, 8388607
        %v161 = vor.u32 %v160, 8388608
        %v162 = vsub.s32 0, %v161
        %v163 = vadd.s32 %v158, 1
        %vm164 = vcmp.gt.s32.totalorder %v163, 0
        %v165 = vsel %vm164, %v163, 0
        %v166 = vshrl.u32 %v165, 5
        %v167 = vand.u32 %v165, 31
        %v168 = vsub.s32 32, %v167
        %v169 = vshrl.u32 683565275, %v168
        %v170 = vshll.u32 683565275, %v167
        %v171 = vshrl.u32 2475754826, %v168
        %v172 = vor.u32 %v170, %v171
        %v173 = vshll.u32 2475754826, %v167
        %v174 = vshrl.u32 2131351028, %v168
        %v175 = vor.u32 %v173, %v174
        %v176 = vshll.u32 2131351028, %v167
        %v177 = vshrl.u32 2102212464, %v168
        %v178 = vor.u32 %v176, %v177
        %v179 = vshll.u32 2102212464, %v167
        %v180 = vshrl.u32 920167782, %v168
        %v181 = vor.u32 %v179, %v180
        %v182 = vshll.u32 920167782, %v167
        %v183 = vshrl.u32 1326507024, %v168
        %v184 = vor.u32 %v182, %v183
        %vm185 = vcmp.lt.s32.totalorder %v166, 1
        %vm186 = vcmp.lt.s32.totalorder %v166, 2
        %vm187 = vcmp.lt.s32.totalorder %v166, 3
        %vm188 = vcmp.lt.s32.totalorder %v166, 4
        %v189 = vsel %vm185, %v169, %v172
        %v190 = vsel %vm188, %v178, 2102212464
        %v191 = vsel %vm187, %v175, %v190
        %v192 = vsel %vm186, %v189, %v191
        %v193 = vsel %vm185, %v172, %v175
        %v194 = vsel %vm188, %v181, 920167782
        %v195 = vsel %vm187, %v178, %v194
        %v196 = vsel %vm186, %v193, %v195
        %v197 = vsel %vm185, %v175, %v178
        %v198 = vsel %vm188, %v184, 1326507024
        %v199 = vsel %vm187, %v181, %v198
        %v200 = vsel %vm186, %v197, %v199
        %v201 = vshll.u32 %v161, 8
        %v202 = vmul.u32.u64.compose %v201, %v200
        %v203 = vextract.low.u32 %v202
        %v204 = vextract.high.u32 %v202
        %v205 = vmul.u32.u64.compose %v201, %v196
        %v206 = vextract.low.u32 %v205
        %v207 = vextract.high.u32 %v205
        %v208 = vmul.u32 %v201, %v192
        %v209 = vadd.s32 %v204, %v206
        %vm210 = vc.u32 %v204, %v206
        %v211 = vadd.s32 %v207, 1
        %v212 = vsel %vm210, %v211, %v207
        %v213 = vadd.s32 %v208, %v212
        %v214 = vadd.s32 %v213, 536870912
        %v215 = vshrl.u32 %v214, 30
        %v216 = vshll.u32 %v215, 30
        %v217 = vsub.s32 %v213, %v216
        %vm218 = vcmp.lt.s32.totalorder %v217, 0
        %v219 = vsub.s32 0, %v217
        %v220 = vsel %vm218, %v219, %v217
        %v221 = vclz %v220
        %v222 = vsub.s32 %v221, 2
        %vm223 = vcmp.gt.s32.totalorder 0, %v222
        %v224 = vsel %vm223, 0, %v222
        %v225 = vsub.s32 32, %v224
        %v226 = vshll.u32 %v217, %v224
        %v227 = vshrl.u32 %v209, %v225
        %v228 = vor.u32 %v226, %v227
        %v229 = vsub.s32 4294967266, %v224
        %v230 = vadd.s32 %v229, 127
        %v231 = vshll.u32 %v230, 23
        %v232 = vor.u32 4788187, %v231
        %v233 = vand.u32 2147483647, %v232
        %v235 = vcvt.s32.f32 %v228
        %v236 = vmul.f32 %v235, %v233
        %v237 = vxor.u32 %v236, 2147483648
        %v238 = vsel %vm155, %v237, %v236
        %v239 = vsub.s32 4, %v215
        %v240 = vsel %vm155, %v239, %v215
        %v241 = vsel %vm154, %v152, %v238
        %v242 = vsel %vm154, 0, %v240
        %v243 = vcosq.f32.pop %v241
        %v244 = vsinq.f32.pop %v241
        %vm245 = vweird.f32 %v152
        %v246 = vadd.s32 %v242, 3
        %v247 = vand.u32 %v246, 3
        %vm248 = vcmp.lt.s32.totalorder %v247, 2
        %vm249 = vcmp.eq.s32.totalorder %v247, 0
        %v250 = vxor.u32 %v244, 2147483648
        %v251 = vsel %vm249, %v243, %v250
        %vm252 = vcmp.eq.s32.totalorder %v247, 2
        %v253 = vxor.u32 %v243, 2147483648
        %v254 = vsel %vm252, %v253, %v244
        %v255 = vsel %vm248, %v251, %v254
        %v256 = vsel %vm245, nan, %v255
        %v257 = vld [vmem:[%s113] sm:$0xff]
        %v258 = vadd.f32 %v257, %v256
        %vm259 = vcmask 261120
        %260 = vst.msk [vmem:[%s131] sm:$0xff] %vm259, %v258
        %s261 = sand.u32 %s52, 1
        %s262 = scalar_lea.sflag [#allocation4], %s261
        %s263 = sand.u32 %s52, 1
        %s264 = smul.addr %s263, 8
        %s265 = scalar_lea.vmem [#allocation5], %s264
        // Predicated region
        $region29: #{tpu_custom_call.1} parent=23 // pred_check
          %p266 = pneg %p62
        $region30: #{tpu_custom_call.1} parent=23 // pred_check_branch
          %268 = sbr.rel (%p266) target = $region32
        $region31: #{tpu_custom_call.1} parent=23 // pred_region
          %s270 = ssub.s32 128, 128
          %271 = vsyncadd %s262, %s270
          %s272 = smul.addr %s18, 128
          %s273 = scalar_lea.hbm %s1, %s272
          %s275 = sshll.u32 %s265, 4
          %s276 = int_to_ptr.vmem [resolvable:$true] %s275
          %278 = dma.vmem_to_hbm [thread:$0]  %s276, 128, %s273, %s262
        $region32: #{tpu_custom_call.1} parent=23 // pred_fallthru
          _
      $region24: #{tpu_custom_call.1} parent=5 // pred_fallthru
        _
      %p279 = scmp.le.s32.totalorder 2, %s13
      // Predicated region
      $region33: #{tpu_custom_call.1} parent=5 // pred_check
        %p280 = pneg %p279
      $region34: #{tpu_custom_call.1} parent=5 // pred_check_branch
        %282 = sbr.rel (%p280) target = $region36
      $region35: #{tpu_custom_call.1} parent=5 // pred_region
        %s283 = ssub.s32 %s13, 2
        // Predicated region
        $region37: #{tpu_custom_call.1} parent=35 // pred_check
          %p284 = pneg %p68
        $region38: #{tpu_custom_call.1} parent=35 // pred_check_branch
          %286 = sbr.rel (%p284) target = $region40
        $region39: #{tpu_custom_call.1} parent=35 // pred_region
          %s287 = sand.u32 %s53, 1
          %s288 = scalar_lea.sflag [#allocation4], %s287
          %s289 = sand.u32 %s53, 1
          %s290 = smul.addr %s289, 8
          %s291 = scalar_lea.vmem [#allocation5], %s290
          %292 = dma.done %s288, 128
        $region40: #{tpu_custom_call.1} parent=35 // pred_fallthru
          _
      $region36: #{tpu_custom_call.1} parent=5 // pred_fallthru
        _
    $region6: #{tpu_custom_call.1} parent=1 // loop_footer
      %s17 = sadd.s32 1, %s13
    $region7: #{tpu_custom_call.1} parent=1 // loop_footer_branch
      %12 = sbr.rel target = $region3
    $region8: #{tpu_custom_call.1} parent=1 // loop_exit
      _
    %293 = vsyncpa [#allocation3], 1
    %s294 = scalar_lea.sflag [#allocation3], 1
    %295 = vsyncpa %s294, 1
    %296 = vsyncpa [#allocation4], 1
    %s297 = scalar_lea.sflag [#allocation4], 1
    %298 = vsyncpa %s297, 1

</llo_original>
